<compile_context>
chip_gen: v6e
topology: v6e:2x2x1
jax: 0.10.0
libtpu: 0.0.40
codegen_flags: <defaults>
</compile_context>

<pallas_src>
import jax
import jax.numpy as jnp
from jax.experimental import pallas as pl
from jax.experimental.pallas import tpu as pltpu


def _activation_fn(name):
    if name == "relu":
        return lambda v: jnp.maximum(v, 0.0)
    if name == "tanh":
        return jnp.tanh
    if name == "sigmoid":
        return jax.nn.sigmoid
    raise ValueError(f"unsupported activation: {name!r}")


def _make_ann_kernel(num_layers, out_dims, activation):
    act = _activation_fn(activation)

    def kernel(x_ref, b_ref, *rest):
        # rest = (w1, w2, ..., wN, out)
        out_ref = rest[-1]
        w_refs = rest[:-1]

        h = x_ref[...]  # bf16 activations feeding the MXU
        logits = None
        for i in range(num_layers):
            w = w_refs[i][...]  # bf16 weights -> native MXU rate
            acc = jnp.dot(h, w, preferred_element_type=jnp.float32)
            # f32 bias row, statically sliced out of the packed bias array.
            acc = acc + b_ref[i:i + 1, :out_dims[i]]
            if i < num_layers - 1:
                acc = act(acc)                    # elementwise in f32
                h = acc.astype(jnp.bfloat16)      # back to bf16 for next MXU op
            else:
                logits = acc

        # torch.softmax(x, dim=1): softmax over the feature (last) axis, f32.
        m = jnp.max(logits, axis=1, keepdims=True)
        e = jnp.exp(logits - m)
        denom = jnp.sum(e, axis=1, keepdims=True)
        inv = pl.reciprocal(denom, approx=True)   # EUP slot, frees VALU
        out_ref[...] = (e * inv).astype(out_ref.dtype)

    return kernel


def ann_forward(x, params, activation="relu"):
    """x: [batch, in] f32; params: list of (W [in, out] f32, b [out] f32)."""
    assert x.ndim == 2, "ANN forward expects 2-D [batch, features] input"
    num_layers = len(params)
    out_dims = tuple(int(w.shape[1]) for w, _ in params)
    out_dim = out_dims[-1]
    batch = int(x.shape[0])

    # bf16 operands at the MXU boundary; accumulation stays f32 in-kernel.
    x_bf16 = x.astype(jnp.bfloat16)
    weights = [w.astype(jnp.bfloat16) for w, _ in params]

    # Pack every bias into one lane-padded f32 array (rows = layers).
    pad = max(128, ((max(out_dims) + 127) // 128) * 128)
    b_packed = jnp.zeros((num_layers, pad), jnp.float32)
    for i, (_, b) in enumerate(params):
        b_packed = b_packed.at[i, : b.shape[0]].set(b)

    kernel = _make_ann_kernel(num_layers, out_dims, activation)

    flops = 2 * batch * sum(int(w.shape[0]) * int(w.shape[1]) for w, _ in params)
    bytes_accessed = (
        x_bf16.size * 2
        + sum(int(w.size) * 2 for w in weights)
        + int(b_packed.size) * 4
        + batch * out_dim * 4
    )
    cost = pl.CostEstimate(
        flops=flops,
        transcendentals=batch * out_dim,  # exp in the softmax epilogue
        bytes_accessed=bytes_accessed,
    )

    n_inputs = 2 + num_layers  # x, packed biases, each weight
    # TODO(synk): for batch >> 8 add a "parallel" batch grid axis (multiple of 8
    # rows per tile) so v7x's 2 TensorCores both get work; at batch=8 a grid
    # only adds per-step overhead.
    return pl.pallas_call(
        kernel,
        out_shape=jax.ShapeDtypeStruct((batch, out_dim), jnp.float32),
        in_specs=[pl.BlockSpec(memory_space=pltpu.MemorySpace.VMEM)] * n_inputs,
        out_specs=pl.BlockSpec(memory_space=pltpu.MemorySpace.VMEM),
        cost_estimate=cost,
    )(x_bf16, b_packed, *weights)


def init_ann_params(key, input_size, output_size, hidden_sizes):
    """Deterministic init matching the module's layer shapes
    (fc1: input->hidden[0], hfcs: hidden[i-1]->hidden[i], fc2: hidden[-1]->out)."""
    dims = [input_size] + list(hidden_sizes) + [output_size]
    params = []
    for i in range(len(dims) - 1):
        fan_in, fan_out = dims[i], dims[i + 1]
        key, kw, kb = jax.random.split(key, 3)
        bound = 1.0 / jnp.sqrt(jnp.float32(fan_in))
        w = jax.random.uniform(
            kw, (fan_in, fan_out), jnp.float32, minval=-bound, maxval=bound
        )
        b = jax.random.uniform(
            kb, (fan_out,), jnp.float32, minval=-bound, maxval=bound
        )
        params.append((w, b))
    return params


def ann_reference(x, params, activation="relu"):
    """Pure-JAX reference mirroring the kernel's bf16-at-MXU / f32-elsewhere dtypes."""
    act = _activation_fn(activation)
    h = x.astype(jnp.bfloat16).astype(jnp.float32)
    n = len(params)
    logits = None
    for i, (w, b) in enumerate(params):
        w32 = w.astype(jnp.bfloat16).astype(jnp.float32)
        acc = h @ w32 + b
        if i < n - 1:
            acc = act(acc)
            h = acc.astype(jnp.bfloat16).astype(jnp.float32)
        else:
            logits = acc
    return jax.nn.softmax(logits, axis=1)


if __name__ == "__main__":
    # Small shapes consistent with the module: batch=8, inputSize=32,
    # hiddenSizes=[64, 64], outputSize=16, activation='relu'.
    batch, input_size, output_size = 8, 32, 16
    hidden_sizes = [64, 64]
    activation = "relu"

    key = jax.random.PRNGKey(0)
    key, kx = jax.random.split(key)
    x = jax.random.normal(kx, (batch, input_size), jnp.float32)

    params = init_ann_params(key, input_size, output_size, hidden_sizes)

    out = ann_forward(x, params, activation=activation)
    out = jax.block_until_ready(out)

    ref = ann_reference(x, params, activation=activation)
    assert out.shape == (batch, output_size)
    assert jnp.allclose(out, ref, atol=1e-2, rtol=1e-2), "mismatch vs reference"
    assert jnp.allclose(jnp.sum(out, axis=1), 1.0, atol=1e-2), "softmax rows != 1"

    print("KERNEL_OK")
</pallas_src>

<mosaic_0001>
module attributes {stable_mosaic.version = 11 : i64} {
  func.func @kernel(%arg0: memref<8x32xbf16, #tpu.memory_space<vmem>>, %arg1: memref<3x128xf32, #tpu.memory_space<vmem>>, %arg2: memref<32x64xbf16, #tpu.memory_space<vmem>>, %arg3: memref<64x64xbf16, #tpu.memory_space<vmem>>, %arg4: memref<64x16xbf16, #tpu.memory_space<vmem>>, %arg5: memref<8x16xf32, #tpu.memory_space<vmem>>) attributes {dimension_semantics = [], scalar_prefetch = 0 : i64, scratch_operands = 0 : i64, tpu.core_type = #tpu.core_type<tc>} {
    %c0 = arith.constant 0 : index
    %c0_0 = arith.constant 0 : index
    %0 = vector.load %arg0[%c0, %c0_0] : memref<8x32xbf16, #tpu.memory_space<vmem>>, vector<8x32xbf16>
    %c0_1 = arith.constant 0 : index
    %c0_2 = arith.constant 0 : index
    %1 = vector.load %arg2[%c0_1, %c0_2] : memref<32x64xbf16, #tpu.memory_space<vmem>>, vector<32x64xbf16>
    %cst = arith.constant dense<0.000000e+00> : vector<8x64xf32>
    %2 = tpu.matmul %0, %1, %cst {dimension_numbers = #tpu.dot_dimension_numbers<[1], [0], [0], [1], [0, 0, 1, 1], [], []>} : vector<8x32xbf16>, vector<32x64xbf16>, vector<8x64xf32> -> vector<8x64xf32>
    %c0_3 = arith.constant 0 : index
    %c0_4 = arith.constant 0 : index
    %3 = vector.load %arg1[%c0_3, %c0_4] : memref<3x128xf32, #tpu.memory_space<vmem>>, vector<1x64xf32>
    %4 = vector.broadcast %3 : vector<1x64xf32> to vector<8x64xf32>
    %5 = arith.addf %2, %4 : vector<8x64xf32>
    %cst_5 = arith.constant 0.000000e+00 : f32
    %6 = vector.broadcast %cst_5 : f32 to vector<8x64xf32>
    %7 = arith.maximumf %5, %6 : vector<8x64xf32>
    %8 = arith.truncf %7 : vector<8x64xf32> to vector<8x64xbf16>
    %c0_6 = arith.constant 0 : index
    %c0_7 = arith.constant 0 : index
    %9 = vector.load %arg3[%c0_6, %c0_7] : memref<64x64xbf16, #tpu.memory_space<vmem>>, vector<64x64xbf16>
    %cst_8 = arith.constant dense<0.000000e+00> : vector<8x64xf32>
    %10 = tpu.matmul %8, %9, %cst_8 {dimension_numbers = #tpu.dot_dimension_numbers<[1], [0], [0], [1], [0, 0, 1, 1], [], []>} : vector<8x64xbf16>, vector<64x64xbf16>, vector<8x64xf32> -> vector<8x64xf32>
    %c1 = arith.constant 1 : index
    %c0_9 = arith.constant 0 : index
    %11 = vector.load %arg1[%c1, %c0_9] : memref<3x128xf32, #tpu.memory_space<vmem>>, vector<1x64xf32>
    %12 = vector.broadcast %11 : vector<1x64xf32> to vector<8x64xf32>
    %13 = arith.addf %10, %12 : vector<8x64xf32>
    %cst_10 = arith.constant 0.000000e+00 : f32
    %14 = vector.broadcast %cst_10 : f32 to vector<8x64xf32>
    %15 = arith.maximumf %13, %14 : vector<8x64xf32>
    %16 = arith.truncf %15 : vector<8x64xf32> to vector<8x64xbf16>
    %c0_11 = arith.constant 0 : index
    %c0_12 = arith.constant 0 : index
    %17 = vector.load %arg4[%c0_11, %c0_12] : memref<64x16xbf16, #tpu.memory_space<vmem>>, vector<64x16xbf16>
    %cst_13 = arith.constant dense<0.000000e+00> : vector<8x16xf32>
    %18 = tpu.matmul %16, %17, %cst_13 {dimension_numbers = #tpu.dot_dimension_numbers<[1], [0], [0], [1], [0, 0, 1, 1], [], []>} : vector<8x64xbf16>, vector<64x16xbf16>, vector<8x16xf32> -> vector<8x16xf32>
    %c2 = arith.constant 2 : index
    %c0_14 = arith.constant 0 : index
    %19 = vector.load %arg1[%c2, %c0_14] : memref<3x128xf32, #tpu.memory_space<vmem>>, vector<1x16xf32>
    %20 = vector.broadcast %19 : vector<1x16xf32> to vector<8x16xf32>
    %21 = arith.addf %18, %20 : vector<8x16xf32>
    %cst_15 = arith.constant dense<0xFF800000> : vector<8xf32>
    %22 = vector.multi_reduction <maximumf>, %21, %cst_15 [1] : vector<8x16xf32> to vector<8xf32>
    %23 = vector.shape_cast %22 : vector<8xf32> to vector<8x1xf32>
    %24 = vector.broadcast %23 : vector<8x1xf32> to vector<8x16xf32>
    %25 = arith.subf %21, %24 : vector<8x16xf32>
    %26 = math.exp %25 : vector<8x16xf32>
    %cst_16 = arith.constant dense<0.000000e+00> : vector<8xf32>
    %27 = vector.multi_reduction <add>, %26, %cst_16 [1] : vector<8x16xf32> to vector<8xf32>
    %28 = vector.shape_cast %27 : vector<8xf32> to vector<8x1xf32>
    %29 = tpu.reciprocal %28 {approx = true} : vector<8x1xf32> -> vector<8x1xf32>
    %30 = vector.broadcast %29 : vector<8x1xf32> to vector<8x16xf32>
    %31 = arith.mulf %26, %30 : vector<8x16xf32>
    %c0_17 = arith.constant 0 : index
    %c0_18 = arith.constant 0 : index
    %32 = vector.load %arg5[%c0_17, %c0_18] : memref<8x16xf32, #tpu.memory_space<vmem>>, vector<8x16xf32>
    tpu.vector_store %arg5[%c0_17, %c0_18], %31 {strides = array<i32>} : memref<8x16xf32, #tpu.memory_space<vmem>>, vector<8x16xf32>,
    return
  }
}

</mosaic_0001>

<llo_original>
// kernel: tpu_custom_call.1
$region0: #{tpu_custom_call.1}
  #allocation0 [shape = 'u32[]', space=smem, size = 0x4, offset = 0x4, fixed_abs, tag = 'smem constant byte address 0x4 - core index']
  #allocation1 [shape = 'u32[144,128]{1,0:T(1,128)}', space=vmem, size = 0x12000, scoped, tag = 'internal scratch']
  %s0 = inlined_call_operand.vmem [shape: bf16[8,32], index: 0, kind: input, shape index: {}]
  %s1 = inlined_call_operand.vmem [shape: f32[3,128], index: 1, kind: input, shape index: {}]
  %s2 = inlined_call_operand.hbm [shape: bf16[32,64], index: 2, kind: input, shape index: {}]
  %s3 = inlined_call_operand.vmem [shape: bf16[64,64], index: 3, kind: input, shape index: {}]
  %s4 = inlined_call_operand.vmem [shape: bf16[64,16], index: 4, kind: input, shape index: {}]
  %s5 = inlined_call_operand.hbm [shape: f32[8,16], index: 5, kind: output, shape index: {}]
  %s6 = sld [smem:[#allocation0]]
  $region34: #{tpu_custom_call.1} parent=0
    _
  %s8 = ssub.s32 1, %s6
  %s9 = scalar_select 0, %s8, %s6
  $region1: #{tpu_custom_call.1} parent=0
    #allocation2 [shape = 'u8[8192]{0}', space=vmem, size = 0x2000, scoped, tag = 'input window, operand 2, single buffered']
    #allocation3 [shape = 's32[1]{0}', space=sflag, size = 0x4, scoped, tag = 'scoped memory for tpu_custom_call.1']
    #allocation4 [shape = 's32[1]{0}', space=sflag, size = 0x4, scoped, tag = 'scoped memory for tpu_custom_call.1']
    #allocation5 [shape = 'u8[4096]{0}', space=vmem, size = 0x1000, scoped, tag = 'output window, operand 0, single buffered']
    %10 = vsyncpa [#allocation3], 0
    %11 = vsyncpa [#allocation4], 0
    // Predicated region
    $region2: #{tpu_custom_call.1} parent=1 // pred_check
      _
    $region3: #{tpu_custom_call.1} parent=1 // pred_check_branch
      %13 = sbr.rel (0) target = $region5
    $region4: #{tpu_custom_call.1} parent=1 // pred_region
      _
    $region5: #{tpu_custom_call.1} parent=1 // pred_fallthru
      _
    // Predicated region
    $region6: #{tpu_custom_call.1} parent=1 // pred_check
      _
    $region7: #{tpu_custom_call.1} parent=1 // pred_check_branch
      %15 = sbr.rel (0) target = $region9
    $region8: #{tpu_custom_call.1} parent=1 // pred_region
      _
    $region9: #{tpu_custom_call.1} parent=1 // pred_fallthru
      _
    // Predicated region
    $region10: #{tpu_custom_call.1} parent=1 // pred_check
      _
    $region11: #{tpu_custom_call.1} parent=1 // pred_check_branch
      %17 = sbr.rel (0) target = $region13
    $region12: #{tpu_custom_call.1} parent=1 // pred_region
      %s19 = ssub.s32 256, 256
      %20 = vsyncadd [#allocation3], %s19
      %s21 = sshll.u32 [#allocation2], 4
      %s22 = int_to_ptr.vmem [resolvable:$true] %s21
      %27 = dma.hbm_to_vmem [thread:$0]  %s2, 256, %s22, [#allocation3], 64, 64, 4
    $region13: #{tpu_custom_call.1} parent=1 // pred_fallthru
      _
    // Predicated region
    $region14: #{tpu_custom_call.1} parent=1 // pred_check
      _
    $region15: #{tpu_custom_call.1} parent=1 // pred_check_branch
      %29 = sbr.rel (0) target = $region17
    $region16: #{tpu_custom_call.1} parent=1 // pred_region
      _
    $region17: #{tpu_custom_call.1} parent=1 // pred_fallthru
      _
    // Predicated region
    $region18: #{tpu_custom_call.1} parent=1 // pred_check
      _
    $region19: #{tpu_custom_call.1} parent=1 // pred_check_branch
      %31 = sbr.rel (0) target = $region21
    $region20: #{tpu_custom_call.1} parent=1 // pred_region
      _
    $region21: #{tpu_custom_call.1} parent=1 // pred_fallthru
      _
    // Predicated region
    $region22: #{tpu_custom_call.1} parent=1 // pred_check
      _
    $region23: #{tpu_custom_call.1} parent=1 // pred_check_branch
      %33 = sbr.rel (0) target = $region25
    $region24: #{tpu_custom_call.1} parent=1 // pred_region
      %34 = dma.done [#allocation3], 256
    $region25: #{tpu_custom_call.1} parent=1 // pred_fallthru
      _
    %v36 = vld [vmem:[%s0] sm:$0xf]
    %v37 = vld [vmem:[#allocation2] sm:$0xf]
    %v38 = vld [vmem:[#allocation2 + $0x4] sm:$0xf]
    %v39 = vld [vmem:[#allocation2 + $0x8] sm:$0xf]
    %v40 = vld [vmem:[#allocation2 + $0xc] sm:$0xf]
    %v41 = vld [vmem:[%s1] sm:$0x1]
    %v42 = vlaneseq
    %v43 = vshrl.u32 %v42, 7
    %v44 = vsub.s32 0, %v43
    %v45 = vrot.slane %v41, %v44
    %v50 = vunpack.c.l.b16 %v37
    %v51 = vunpack.c.l.b16 %v38
    %v52 = vunpack.c.l.b16 %v39
    %v53 = vunpack.c.l.b16 %v40
    %v54 = vpack.c.b16 %v51, %v50
    %v55 = vpack.c.b16 %v53, %v52
    %vm58 = vcmask 261120
    %v60 = vsel %vm58, %v36, 0
    %62 = vmatprep.subr.bf16.mxu0 0
    %63 = vmatpush1.bf16.msra.mxu0 0
    %64 = vmatprep.subr.bf16.mxu0 0
    %65 = vmatpush1.bf16.msra.mxu0 0
    %66 = vmatprep.subr.bf16.mxu0 0
    %67 = vmatpush1.bf16.msra.mxu0 0
    %68 = vmatprep.subr.bf16.mxu0 0
    %69 = vmatpush1.bf16.msra.mxu0 0
    %70 = vmatprep.subr.bf16.mxu0 0
    %71 = vmatpush1.bf16.msra.mxu0 0
    %72 = vmatprep.subr.bf16.mxu0 0
    %73 = vmatpush1.bf16.msra.mxu0 0
    %74 = vmatprep.subr.bf16.mxu0 0
    %75 = vmatpush1.bf16.msra.mxu0 %v55
    %76 = vmatprep.subr.bf16.mxu0 0
    %77 = vmatpush1.bf16.msra.mxu0 %v54
    %78 = vmatprep.subr.bf16.mxu0 0
    %79 = vmatpush2.bf16.msra.mxu0 0
    %80 = vmatprep.subr.bf16.mxu0 0
    %81 = vmatpush2.bf16.msra.mxu0 0
    %82 = vmatprep.subr.bf16.mxu0 0
    %83 = vmatpush2.bf16.msra.mxu0 0
    %84 = vmatprep.subr.bf16.mxu0 0
    %85 = vmatpush2.bf16.msra.mxu0 0
    %86 = vmatprep.subr.bf16.mxu0 0
    %87 = vmatpush2.bf16.msra.mxu0 0
    %88 = vmatprep.subr.bf16.mxu0 0
    %89 = vmatpush2.bf16.msra.mxu0 0
    %90 = vmatprep.subr.bf16.mxu0 0
    %91 = vmatpush2.bf16.msra.mxu0 0
    %92 = vmatprep.subr.bf16.mxu0 0
    %93 = vmatpush2.bf16.msra.mxu0 0
    %94 = vmatprep.mubr.bf16.mxu0 0
    %95 = vmatmul.mubr.bf16.gmra.mxu0 %v60
    %v96 = vpop.f32.mrf.mxu0
    %v97 = vadd.f32 %v45, %v96
    %v98 = vpop.f32.mrf.mxu0
    %v99 = vpop.f32.mrf.mxu0
    %v100 = vpop.f32.mrf.mxu0
    %101 = vdwg.mxu0
    %v102 = vmax.f32 %v97, 0.0
    %v103 = vpack.c.bf16 %v102, %v102
    %v104 = vld [vmem:[%s3] sm:$0xf]
    %v105 = vld [vmem:[%s3 + $0x4] sm:$0xf]
    %v106 = vld [vmem:[%s3 + $0x8] sm:$0xf]
    %v107 = vld [vmem:[%s3 + $0xc] sm:$0xf]
    %v108 = vld [vmem:[%s3 + $0x10] sm:$0xf]
    %v109 = vld [vmem:[%s3 + $0x14] sm:$0xf]
    %v110 = vld [vmem:[%s3 + $0x18] sm:$0xf]
    %v111 = vld [vmem:[%s3 + $0x1c] sm:$0xf]
    %v112 = vld [vmem:[%s1 + $0x1] sm:$0x1]
    %v113 = vlaneseq
    %v114 = vshrl.u32 %v113, 7
    %v115 = vsub.s32 0, %v114
    %v116 = vrot.slane %v112, %v115
    %v125 = vunpack.c.l.b16 %v104
    %v126 = vunpack.c.l.b16 %v105
    %v127 = vunpack.c.l.b16 %v106
    %v128 = vunpack.c.l.b16 %v107
    %v129 = vunpack.c.l.b16 %v108
    %v130 = vunpack.c.l.b16 %v109
    %v131 = vunpack.c.l.b16 %v110
    %v132 = vunpack.c.l.b16 %v111
    %v133 = vpack.c.b16 %v126, %v125
    %v134 = vpack.c.b16 %v128, %v127
    %v135 = vpack.c.b16 %v130, %v129
    %v136 = vpack.c.b16 %v132, %v131
    %vm141 = vcmask 523264
    %v143 = vsel %vm141, %v103, 0
    %145 = vmatprep.subr.bf16.mxu0 0
    %146 = vmatpush1.bf16.msra.mxu0 0
    %147 = vmatprep.subr.bf16.mxu0 0
    %148 = vmatpush1.bf16.msra.mxu0 0
    %149 = vmatprep.subr.bf16.mxu0 0
    %150 = vmatpush1.bf16.msra.mxu0 0
    %151 = vmatprep.subr.bf16.mxu0 0
    %152 = vmatpush1.bf16.msra.mxu0 0
    %153 = vmatprep.subr.bf16.mxu0 0
    %154 = vmatpush1.bf16.msra.mxu0 %v136
    %155 = vmatprep.subr.bf16.mxu0 0
    %156 = vmatpush1.bf16.msra.mxu0 %v135
    %157 = vmatprep.subr.bf16.mxu0 0
    %158 = vmatpush1.bf16.msra.mxu0 %v134
    %159 = vmatprep.subr.bf16.mxu0 0
    %160 = vmatpush1.bf16.msra.mxu0 %v133
    %161 = vmatprep.subr.bf16.mxu0 0
    %162 = vmatpush2.bf16.msra.mxu0 0
    %163 = vmatprep.subr.bf16.mxu0 0
    %164 = vmatpush2.bf16.msra.mxu0 0
    %165 = vmatprep.subr.bf16.mxu0 0
    %166 = vmatpush2.bf16.msra.mxu0 0
    %167 = vmatprep.subr.bf16.mxu0 0
    %168 = vmatpush2.bf16.msra.mxu0 0
    %169 = vmatprep.subr.bf16.mxu0 0
    %170 = vmatpush2.bf16.msra.mxu0 0
    %171 = vmatprep.subr.bf16.mxu0 0
    %172 = vmatpush2.bf16.msra.mxu0 0
    %173 = vmatprep.subr.bf16.mxu0 0
    %174 = vmatpush2.bf16.msra.mxu0 0
    %175 = vmatprep.subr.bf16.mxu0 0
    %176 = vmatpush2.bf16.msra.mxu0 0
    %177 = vmatprep.mubr.bf16.mxu0 0
    %178 = vmatmul.mubr.bf16.gmra.mxu0 %v143
    %v179 = vpop.f32.mrf.mxu0
    %v180 = vadd.f32 %v116, %v179
    %v181 = vpop.f32.mrf.mxu0
    %v182 = vpop.f32.mrf.mxu0
    %v183 = vpop.f32.mrf.mxu0
    %184 = vdwg.mxu0
    %v185 = vmax.f32 %v180, 0.0
    %v186 = vpack.c.bf16 %v185, %v185
    %v187 = vld [vmem:[%s4] sm:$0xf]
    %v188 = vld [vmem:[%s4 + $0x4] sm:$0xf]
    %v189 = vld [vmem:[%s4 + $0x8] sm:$0xf]
    %v190 = vld [vmem:[%s4 + $0xc] sm:$0xf]
    %v191 = vld [vmem:[%s4 + $0x10] sm:$0xf]
    %v192 = vld [vmem:[%s4 + $0x14] sm:$0xf]
    %v193 = vld [vmem:[%s4 + $0x18] sm:$0xf]
    %v194 = vld [vmem:[%s4 + $0x1c] sm:$0xf]
    %v195 = vld [vmem:[%s1 + $0x2] sm:$0x1]
    %v196 = vlaneseq
    %v197 = vshrl.u32 %v196, 7
    %v198 = vsub.s32 0, %v197
    %v199 = vrot.slane %v195, %v198
    %v208 = vunpack.c.l.b16 %v187
    %v209 = vunpack.c.l.b16 %v188
    %v210 = vunpack.c.l.b16 %v189
    %v211 = vunpack.c.l.b16 %v190
    %v212 = vunpack.c.l.b16 %v191
    %v213 = vunpack.c.l.b16 %v192
    %v214 = vunpack.c.l.b16 %v193
    %v215 = vunpack.c.l.b16 %v194
    %v216 = vpack.c.b16 %v209, %v208
    %v217 = vpack.c.b16 %v211, %v210
    %v218 = vpack.c.b16 %v213, %v212
    %v219 = vpack.c.b16 %v215, %v214
    %v225 = vsel %vm141, %v186, 0
    %227 = vmatprep.subr.bf16.mxu0 0
    %228 = vmatpush1.bf16.msra.mxu0 0
    %229 = vmatprep.subr.bf16.mxu0 0
    %230 = vmatpush1.bf16.msra.mxu0 0
    %231 = vmatprep.subr.bf16.mxu0 0
    %232 = vmatpush1.bf16.msra.mxu0 0
    %233 = vmatprep.subr.bf16.mxu0 0
    %234 = vmatpush1.bf16.msra.mxu0 0
    %235 = vmatprep.subr.bf16.mxu0 0
    %236 = vmatpush1.bf16.msra.mxu0 %v219
    %237 = vmatprep.subr.bf16.mxu0 0
    %238 = vmatpush1.bf16.msra.mxu0 %v218
    %239 = vmatprep.subr.bf16.mxu0 0
    %240 = vmatpush1.bf16.msra.mxu0 %v217
    %241 = vmatprep.subr.bf16.mxu0 0
    %242 = vmatpush1.bf16.msra.mxu0 %v216
    %243 = vmatprep.subr.bf16.mxu0 0
    %244 = vmatpush2.bf16.msra.mxu0 0
    %245 = vmatprep.subr.bf16.mxu0 0
    %246 = vmatpush2.bf16.msra.mxu0 0
    %247 = vmatprep.subr.bf16.mxu0 0
    %248 = vmatpush2.bf16.msra.mxu0 0
    %249 = vmatprep.subr.bf16.mxu0 0
    %250 = vmatpush2.bf16.msra.mxu0 0
    %251 = vmatprep.subr.bf16.mxu0 0
    %252 = vmatpush2.bf16.msra.mxu0 0
    %253 = vmatprep.subr.bf16.mxu0 0
    %254 = vmatpush2.bf16.msra.mxu0 0
    %255 = vmatprep.subr.bf16.mxu0 0
    %256 = vmatpush2.bf16.msra.mxu0 0
    %257 = vmatprep.subr.bf16.mxu0 0
    %258 = vmatpush2.bf16.msra.mxu0 0
    %259 = vmatprep.mubr.bf16.mxu0 0
    %260 = vmatmul.mubr.bf16.gmra.mxu0 %v225
    %v261 = vpop.f32.mrf.mxu0
    %v262 = vadd.f32 %v199, %v261
    %v263 = vpop.f32.mrf.mxu0
    %v264 = vpop.f32.mrf.mxu0
    %v265 = vpop.f32.mrf.mxu0
    %266 = vdwg.mxu0
    %vm267 = vcmask 130048
    %v268 = vsel %vm267, %v262, -inf
    %269 = vmax.xlane.f32.xlu0 %v268
    %v270 = vpop.xlane.xlu0 %269
    %v271 = vsub.f32 %v262, %v270
    %v272 = vmul.f32 %v271, 1.442695
    %v273 = vpow.pop %v272
    %v274 = vsel %vm267, %v273, 0.0
    %275 = vadd.xlane.f32.xlu0 %v274
    %v276 = vpop.xlane.xlu0 %275
    %v277 = vrcp.pop %v276
    %v278 = vmul.f32 %v273, %v277
    %279 = vst.msk [vmem:[#allocation5] sm:$0xff] %vm267, %v278
    // Predicated region
    $region26: #{tpu_custom_call.1} parent=1 // pred_check
      _
    $region27: #{tpu_custom_call.1} parent=1 // pred_check_branch
      %281 = sbr.rel (0) target = $region29
    $region28: #{tpu_custom_call.1} parent=1 // pred_region
      %s283 = ssub.s32 128, 128
      %284 = vsyncadd [#allocation4], %s283
      %s286 = sshll.u32 [#allocation5], 4
      %s287 = int_to_ptr.vmem [resolvable:$true] %s286
      %289 = dma.vmem_to_hbm [thread:$0]  %s287, 128, %s5, [#allocation4]
    $region29: #{tpu_custom_call.1} parent=1 // pred_fallthru
      _
    // Predicated region
    $region30: #{tpu_custom_call.1} parent=1 // pred_check
      _
    $region31: #{tpu_custom_call.1} parent=1 // pred_check_branch
      %291 = sbr.rel (0) target = $region33
    $region32: #{tpu_custom_call.1} parent=1 // pred_region
      %292 = dma.done [#allocation4], 128
    $region33: #{tpu_custom_call.1} parent=1 // pred_fallthru
      _
    %293 = vsyncpa [#allocation3], 1
    %294 = vsyncpa [#allocation4], 1

</llo_original>
